<compile_context>
chip_gen: v5e
topology: v5e:2x2
jax: 0.10.0
libtpu: 0.0.40
codegen_flags: <defaults>
</compile_context>

<pallas_src>
import functools

import jax
import jax.numpy as jnp
from jax.experimental import pallas as pl
from jax.experimental.pallas import tpu as pltpu

_NEG = -1e30  # masks padded softmax columns (exp underflows to exactly 0)


def _round_up(n, m):
    return (n + m - 1) // m * m


def routing_kernel(params_ref, x_ref, out_ref, *, ni_p, lanes, container):
    """Fused fc1->relu->fc2->relu->fc3->softmax over one batch tile.

    params_ref row layout (all rows are `lanes` wide, fp32):
      [0,                ni_p)              W1^T  (real cols [:hidden])
      [ni_p,             ni_p+8)            b1    (row 0)
      [ni_p+8,           ni_p+8+lanes)      W2^T  (real block [:hidden,:hidden])
      [ni_p+8+lanes,     ni_p+16+lanes)     b2    (row 0)
      [ni_p+16+lanes,    ni_p+16+2*lanes)   W3^T  (real block [:hidden,:container])
      [ni_p+16+2*lanes,  ni_p+24+2*lanes)   b3    (row 0; padded cols = -1e30)
    All slice offsets are multiples of 8 sublanes -> tile-aligned views.
    """
    r = 0
    w1 = params_ref[r:r + ni_p, :]
    r += ni_p
    b1 = params_ref[r:r + 1, :]
    r += 8
    w2 = params_ref[r:r + lanes, :]
    r += lanes
    b2 = params_ref[r:r + 1, :]
    r += 8
    w3 = params_ref[r:r + lanes, :]
    r += lanes
    b3 = params_ref[r:r + 1, :]

    x = x_ref[...]                                                     # (TB, ni_p)
    h1 = jnp.maximum(jnp.dot(x, w1, preferred_element_type=jnp.float32) + b1, 0.0)
    h2 = jnp.maximum(jnp.dot(h1, w2, preferred_element_type=jnp.float32) + b2, 0.0)
    logits = jnp.dot(h2, w3, preferred_element_type=jnp.float32) + b3  # padded cols ~ -1e30
    m = jnp.max(logits, axis=-1, keepdims=True)
    e = jnp.exp(logits - m)                                            # padded cols -> 0
    denom = jnp.sum(e, axis=-1, keepdims=True)
    # exact reciprocal to keep 1e-5 accuracy; approx=True would use the EUP but
    # relaxes accuracy to ~1e-3.
    probs = e * pl.reciprocal(denom, approx=False)
    # Store only the real container lanes: the narrow (TB, container) output
    # block cuts HBM write bytes ~8x vs the 128-lane padded store.
    out_ref[...] = probs[:, :container].astype(out_ref.dtype)


def pack_params(params, num_in, hidden, container):
    """Pack W1^T,b1,W2^T,b2,W3^T,b3 into one lane-dense fp32 buffer."""
    w1t, b1, w2t, b2, w3t, b3 = params
    ni_p = _round_up(num_in, 8)
    lanes = _round_up(max(hidden, container), 128)
    rows = ni_p + 24 + 2 * lanes
    buf = jnp.zeros((rows, lanes), jnp.float32)

    r = 0
    buf = buf.at[r:r + num_in, :hidden].set(w1t)
    r = ni_p
    buf = buf.at[r, :hidden].set(b1.reshape(-1))
    r += 8
    buf = buf.at[r:r + hidden, :hidden].set(w2t)
    r += lanes
    buf = buf.at[r, :hidden].set(b2.reshape(-1))
    r += 8
    buf = buf.at[r:r + hidden, :container].set(w3t)
    r += lanes
    b3_row = jnp.full((lanes,), _NEG, jnp.float32).at[:container].set(b3.reshape(-1))
    buf = buf.at[r, :].set(b3_row)
    return buf, ni_p, lanes


def routing_net_forward(x, params, user_number, *, tile_cap=1024):
    """x: (B, num_in) float32. Returns (B, user_number, container_number).

    NOTE: valid only because the PyTorch model aliases ONE fc3 Linear across
    all `user_number` heads ([Linear]*N wrapped in ModuleList); the head axis
    is therefore a pure broadcast.
    """
    w1t, _, _, _, w3t, _ = params
    B, num_in = x.shape
    hidden = w1t.shape[1]
    container = w3t.shape[1]

    packed, ni_p, lanes = pack_params(params, num_in, hidden, container)

    # Batch tile: multiple of 8 sublanes, capped at `tile_cap` rows per grid step
    # (amortizes ~0.35us/step overhead). Splitting into >=2 tiles whenever B > 8
    # lets dimension_semantics=("parallel",) shard tiles across both v7x TCs.
    tb = min(tile_cap, _round_up(max((B + 1) // 2, 1), 8))
    bp = _round_up(B, tb)
    if bp == B and ni_p == num_in:
        x_pad = x
    else:
        x_pad = jnp.zeros((bp, ni_p), x.dtype).at[:B, :num_in].set(x)

    kernel = functools.partial(routing_kernel, ni_p=ni_p, lanes=lanes,
                               container=container)
    out = pl.pallas_call(
        kernel,
        out_shape=jax.ShapeDtypeStruct((bp, container), jnp.float32),
        grid=(bp // tb,),
        in_specs=[
            # Packed weights: one DMA, constant block index -> resident across
            # steps; single-buffered since the block never changes.
            pl.BlockSpec((packed.shape[0], lanes), lambda i: (0, 0),
                         pipeline_mode=pl.Buffered(buffer_count=1)),
            # x minor dim kept at ni_p (NOT padded to 128 lanes): legal because
            # it equals the full array dim, and it avoids 4x-ing read traffic.
            pl.BlockSpec((tb, ni_p), lambda i: (i, 0)),
        ],
        # Narrow, real-width output (last dim == full array dim).
        out_specs=pl.BlockSpec((tb, container), lambda i: (i, 0)),
        compiler_params=pltpu.CompilerParams(
            dimension_semantics=("parallel",)),  # v7x: batch tiles across both TCs
    )(packed, x_pad)

    head = out[:B]
    # All fc3 heads share weights (list-multiplication aliasing) => stack is a broadcast.
    return jnp.broadcast_to(head[:, None, :], (B, user_number, container))


def init_params(key, num_in, hidden_dim, container_number):
    """PyTorch-Linear-like init U(-1/sqrt(fan_in), 1/sqrt(fan_in)); weights pre-transposed."""
    ks = jax.random.split(key, 6)

    def uni(k, shape, fan_in):
        bound = 1.0 / jnp.sqrt(jnp.float32(fan_in))
        return jax.random.uniform(k, shape, jnp.float32, -bound, bound)

    w1t = uni(ks[0], (num_in, hidden_dim), num_in)
    b1 = uni(ks[1], (1, hidden_dim), num_in)
    w2t = uni(ks[2], (hidden_dim, hidden_dim), hidden_dim)
    b2 = uni(ks[3], (1, hidden_dim), hidden_dim)
    w3t = uni(ks[4], (hidden_dim, container_number), hidden_dim)
    b3 = uni(ks[5], (1, container_number), hidden_dim)
    return (w1t, b1, w2t, b2, w3t, b3)


def reference_forward(x, params, user_number):
    """Pure-JAX reference of the PyTorch forward."""
    w1t, b1, w2t, b2, w3t, b3 = params
    h1 = jax.nn.relu(x @ w1t + b1)
    h2 = jax.nn.relu(h1 @ w2t + b2)
    head = jax.nn.softmax(h2 @ w3t + b3, axis=-1)
    return jnp.broadcast_to(head[:, None, :], (x.shape[0], user_number, w3t.shape[1]))


if __name__ == "__main__":
    num_in = 32        # observation / input dim
    hidden_dim = 32
    user_number = 4
    container_number = 16

    key = jax.random.PRNGKey(0)
    kx, kp, kx2 = jax.random.split(key, 3)
    params = init_params(kp, num_in, hidden_dim, container_number)

    # Small batch (single grid step).
    B = 8
    x = jax.random.normal(kx, (B, num_in), dtype=jnp.float32)
    out = jax.block_until_ready(routing_net_forward(x, params, user_number))
    ref = reference_forward(x, params, user_number)
    assert out.shape == (B, user_number, container_number)
    assert jnp.allclose(out, ref, atol=1e-5, rtol=1e-5)
    assert jnp.allclose(jnp.sum(out, axis=-1), 1.0, atol=1e-5)

    # Medium batch: exercises >=2 grid steps (v7x dual-TC path) + padded batch rows.
    B2 = 300
    x2 = jax.random.normal(kx2, (B2, num_in), dtype=jnp.float32)
    out2 = jax.block_until_ready(routing_net_forward(x2, params, user_number))
    ref2 = reference_forward(x2, params, user_number)
    assert out2.shape == (B2, user_number, container_number)
    assert jnp.allclose(out2, ref2, atol=1e-5, rtol=1e-5)
    assert jnp.allclose(jnp.sum(out2, axis=-1), 1.0, atol=1e-5)

    print("KERNEL_OK")
</pallas_src>

<mosaic_0001>
module attributes {stable_mosaic.version = 11 : i64} {
  func.func @routing_kernel(%arg0: i32, %arg1: memref<312x128xf32, #tpu.memory_space<vmem>>, %arg2: memref<8x32xf32, #tpu.memory_space<vmem>>, %arg3: memref<8x16xf32, #tpu.memory_space<vmem>>) attributes {dimension_semantics = [#tpu.dimension_semantics<parallel>], iteration_bounds = array<i64: 1>, scalar_prefetch = 0 : i64, scratch_operands = 0 : i64, tpu.core_type = #tpu.core_type<tc>, window_params = [{pipeline_mode = #tpu.pipeline_mode<synchronous>, transform_indices = @transform_0, window_bounds = array<i64: 312, 128>}, {transform_indices = @transform_1, window_bounds = array<i64: 8, 32>}, {transform_indices = @transform_2, window_bounds = array<i64: 8, 16>}]} {
    %c0 = arith.constant 0 : index
    %c0_0 = arith.constant 0 : index
    %0 = vector.load %arg1[%c0, %c0_0] : memref<312x128xf32, #tpu.memory_space<vmem>>, vector<32x128xf32>
    %c32 = arith.constant 32 : index
    %c0_1 = arith.constant 0 : index
    %1 = vector.load %arg1[%c32, %c0_1] : memref<312x128xf32, #tpu.memory_space<vmem>>, vector<1x128xf32>
    %c40 = arith.constant 40 : index
    %c0_2 = arith.constant 0 : index
    %2 = vector.load %arg1[%c40, %c0_2] : memref<312x128xf32, #tpu.memory_space<vmem>>, vector<128x128xf32>
    %c168 = arith.constant 168 : index
    %c0_3 = arith.constant 0 : index
    %3 = vector.load %arg1[%c168, %c0_3] : memref<312x128xf32, #tpu.memory_space<vmem>>, vector<1x128xf32>
    %c176 = arith.constant 176 : index
    %c0_4 = arith.constant 0 : index
    %4 = vector.load %arg1[%c176, %c0_4] : memref<312x128xf32, #tpu.memory_space<vmem>>, vector<128x128xf32>
    %c304 = arith.constant 304 : index
    %c0_5 = arith.constant 0 : index
    %5 = vector.load %arg1[%c304, %c0_5] : memref<312x128xf32, #tpu.memory_space<vmem>>, vector<1x128xf32>
    %c0_6 = arith.constant 0 : index
    %c0_7 = arith.constant 0 : index
    %6 = vector.load %arg2[%c0_6, %c0_7] : memref<8x32xf32, #tpu.memory_space<vmem>>, vector<8x32xf32>
    %cst = arith.constant dense<0.000000e+00> : vector<8x128xf32>
    %7 = tpu.matmul %6, %0, %cst {dimension_numbers = #tpu.dot_dimension_numbers<[1], [0], [0], [1], [0, 0, 1, 1], [], []>} : vector<8x32xf32>, vector<32x128xf32>, vector<8x128xf32> -> vector<8x128xf32>
    %8 = vector.broadcast %1 : vector<1x128xf32> to vector<8x128xf32>
    %9 = arith.addf %7, %8 : vector<8x128xf32>
    %cst_8 = arith.constant 0.000000e+00 : f32
    %10 = vector.broadcast %cst_8 : f32 to vector<8x128xf32>
    %11 = arith.maximumf %9, %10 : vector<8x128xf32>
    %cst_9 = arith.constant dense<0.000000e+00> : vector<8x128xf32>
    %12 = tpu.matmul %11, %2, %cst_9 {dimension_numbers = #tpu.dot_dimension_numbers<[1], [0], [0], [1], [0, 0, 1, 1], [], []>} : vector<8x128xf32>, vector<128x128xf32>, vector<8x128xf32> -> vector<8x128xf32>
    %13 = vector.broadcast %3 : vector<1x128xf32> to vector<8x128xf32>
    %14 = arith.addf %12, %13 : vector<8x128xf32>
    %cst_10 = arith.constant 0.000000e+00 : f32
    %15 = vector.broadcast %cst_10 : f32 to vector<8x128xf32>
    %16 = arith.maximumf %14, %15 : vector<8x128xf32>
    %cst_11 = arith.constant dense<0.000000e+00> : vector<8x128xf32>
    %17 = tpu.matmul %16, %4, %cst_11 {dimension_numbers = #tpu.dot_dimension_numbers<[1], [0], [0], [1], [0, 0, 1, 1], [], []>} : vector<8x128xf32>, vector<128x128xf32>, vector<8x128xf32> -> vector<8x128xf32>
    %18 = vector.broadcast %5 : vector<1x128xf32> to vector<8x128xf32>
    %19 = arith.addf %17, %18 : vector<8x128xf32>
    %cst_12 = arith.constant dense<0xFF800000> : vector<8xf32>
    %20 = vector.multi_reduction <maximumf>, %19, %cst_12 [1] : vector<8x128xf32> to vector<8xf32>
    %21 = vector.shape_cast %20 : vector<8xf32> to vector<8x1xf32>
    %22 = vector.broadcast %21 : vector<8x1xf32> to vector<8x128xf32>
    %23 = arith.subf %19, %22 : vector<8x128xf32>
    %24 = math.exp %23 : vector<8x128xf32>
    %cst_13 = arith.constant dense<0.000000e+00> : vector<8xf32>
    %25 = vector.multi_reduction <add>, %24, %cst_13 [1] : vector<8x128xf32> to vector<8xf32>
    %26 = vector.shape_cast %25 : vector<8xf32> to vector<8x1xf32>
    %27 = tpu.reciprocal %26 : vector<8x1xf32> -> vector<8x1xf32>
    %28 = vector.broadcast %27 : vector<8x1xf32> to vector<8x128xf32>
    %29 = arith.mulf %24, %28 : vector<8x128xf32>
    %30 = vector.extract_strided_slice %29 {offsets = [0, 0], sizes = [8, 16], strides = [1, 1]} : vector<8x128xf32> to vector<8x16xf32>
    %c0_14 = arith.constant 0 : index
    %c0_15 = arith.constant 0 : index
    %31 = vector.load %arg3[%c0_14, %c0_15] : memref<8x16xf32, #tpu.memory_space<vmem>>, vector<8x16xf32>
    tpu.vector_store %arg3[%c0_14, %c0_15], %30 {strides = array<i32>} : memref<8x16xf32, #tpu.memory_space<vmem>>, vector<8x16xf32>,
    return
  }
  func.func @transform_0(%arg0: i32) -> (i32, i32) {
    %c0_i32 = arith.constant 0 : i32
    %c0_i32_0 = arith.constant 0 : i32
    %c0_i32_1 = arith.constant 0 : i32
    return %c0_i32, %c0_i32_0 : i32, i32
  }
  func.func @transform_1(%arg0: i32) -> (i32, i32) {
    %c0_i32 = arith.constant 0 : i32
    %c0_i32_0 = arith.constant 0 : i32
    return %arg0, %c0_i32 : i32, i32
  }
  func.func @transform_2(%arg0: i32) -> (i32, i32) {
    %c0_i32 = arith.constant 0 : i32
    %c0_i32_0 = arith.constant 0 : i32
    return %arg0, %c0_i32 : i32, i32
  }
}

</mosaic_0001>

<llo_original>
// kernel: tpu_custom_call.1
$region0: #{tpu_custom_call.1}
  #allocation0 [shape = 'u32[]', space=smem, size = 0x4, offset = 0x4, fixed_abs, tag = 'smem constant byte address 0x4 - core index']
  #allocation1 [shape = 'u32[72,128]{1,0:T(1,128)}', space=vmem, size = 0x9000, scoped, tag = 'internal scratch']
  %s0 = inlined_call_operand.hbm [shape: f32[312,128], index: 0, kind: input, shape index: {}]
  %s1 = inlined_call_operand.hbm [shape: f32[8,32], index: 1, kind: input, shape index: {}]
  %s2 = inlined_call_operand.hbm [shape: f32[8,16], index: 2, kind: output, shape index: {}]
  %s3 = sld [smem:[#allocation0]]
  $region26: #{tpu_custom_call.1} parent=0
    _
  %s5 = ssub.s32 1, %s3
  %s6 = scalar_select 0, %s5, %s3
  $region1: #{tpu_custom_call.1} parent=0
    #allocation2 [shape = 'u8[159744]{0}', space=vmem, size = 0x27000, scoped, tag = 'input window, operand 0, single buffered']
    #allocation3 [shape = 's32[1]{0}', space=sflag, size = 0x4, scoped, tag = 'scoped memory for tpu_custom_call.1']
    #allocation4 [shape = 's32[1]{0}', space=sflag, size = 0x4, scoped, tag = 'scoped memory for tpu_custom_call.1']
    #allocation5 [shape = 'u8[4096]{0}', space=vmem, size = 0x1000, scoped, tag = 'input window, operand 1, single buffered']
    #allocation6 [shape = 's32[1]{0}', space=sflag, size = 0x4, scoped, tag = 'scoped memory for tpu_custom_call.1']
    #allocation7 [shape = 'u8[4096]{0}', space=vmem, size = 0x1000, scoped, tag = 'output window, operand 0, single buffered']
    %7 = vsyncpa [#allocation3], 0
    %8 = vsyncpa [#allocation6], 0
    %9 = vsyncpa [#allocation4], 0
    // Predicated region
    $region2: #{tpu_custom_call.1} parent=1 // pred_check
      _
    $region3: #{tpu_custom_call.1} parent=1 // pred_check_branch
      %11 = sbr.rel (0) target = $region5
    $region4: #{tpu_custom_call.1} parent=1 // pred_region
      %13 = vsyncadd [#allocation3], 0
      %s14 = sshll.u32 %s0, 4
      %s15 = int_to_ptr.hbm [resolvable:$true] %s14
      %s16 = sshll.u32 [#allocation2], 4
      %s17 = int_to_ptr.vmem [resolvable:$true] %s16
      %22 = dma.hbm_to_vmem [thread:$0]  %s15, 4992, %s17, [#allocation3], 128, 128, 8
    $region5: #{tpu_custom_call.1} parent=1 // pred_fallthru
      _
    // Predicated region
    $region6: #{tpu_custom_call.1} parent=1 // pred_check
      _
    $region7: #{tpu_custom_call.1} parent=1 // pred_check_branch
      %24 = sbr.rel (0) target = $region9
    $region8: #{tpu_custom_call.1} parent=1 // pred_region
      %26 = vsyncadd [#allocation6], 0
      %s28 = sshll.u32 %s1, 4
      %s29 = int_to_ptr.hbm [resolvable:$true] %s28
      %s30 = sshll.u32 [#allocation5], 4
      %s31 = int_to_ptr.vmem [resolvable:$true] %s30
      %33 = dma.hbm_to_vmem [thread:$0]  %s29, 128, %s31, [#allocation6]
    $region9: #{tpu_custom_call.1} parent=1 // pred_fallthru
      _
    // Predicated region
    $region10: #{tpu_custom_call.1} parent=1 // pred_check
      _
    $region11: #{tpu_custom_call.1} parent=1 // pred_check_branch
      %35 = sbr.rel (0) target = $region13
    $region12: #{tpu_custom_call.1} parent=1 // pred_region
      %37 = dma.done [#allocation3], 4992
    $region13: #{tpu_custom_call.1} parent=1 // pred_fallthru
      _
    // Predicated region
    $region14: #{tpu_custom_call.1} parent=1 // pred_check
      _
    $region15: #{tpu_custom_call.1} parent=1 // pred_check_branch
      %39 = sbr.rel (0) target = $region17
    $region16: #{tpu_custom_call.1} parent=1 // pred_region
      %41 = dma.done [#allocation6], 128
    $region17: #{tpu_custom_call.1} parent=1 // pred_fallthru
      _
    %v42 = vld [vmem:[#allocation2] sm:$0xff]
    %v43 = vld [vmem:[#allocation2 + $0x8] sm:$0xff]
    %v44 = vld [vmem:[#allocation2 + $0x10] sm:$0xff]
    %v45 = vld [vmem:[#allocation2 + $0x18] sm:$0xff]
    %v46 = vld [vmem:[#allocation2 + $0x20] sm:$0x1]
    %v47 = vld [vmem:[#allocation2 + $0x28] sm:$0xff]
    %v48 = vld [vmem:[#allocation2 + $0x30] sm:$0xff]
    %v49 = vld [vmem:[#allocation2 + $0x38] sm:$0xff]
    %v50 = vld [vmem:[#allocation2 + $0x40] sm:$0xff]
    %v51 = vld [vmem:[#allocation2 + $0x48] sm:$0xff]
    %v52 = vld [vmem:[#allocation2 + $0x50] sm:$0xff]
    %v53 = vld [vmem:[#allocation2 + $0x58] sm:$0xff]
    %v54 = vld [vmem:[#allocation2 + $0x60] sm:$0xff]
    %v55 = vld [vmem:[#allocation2 + $0x68] sm:$0xff]
    %v56 = vld [vmem:[#allocation2 + $0x70] sm:$0xff]
    %v57 = vld [vmem:[#allocation2 + $0x78] sm:$0xff]
    %v58 = vld [vmem:[#allocation2 + $0x80] sm:$0xff]
    %v59 = vld [vmem:[#allocation2 + $0x88] sm:$0xff]
    %v60 = vld [vmem:[#allocation2 + $0x90] sm:$0xff]
    %v61 = vld [vmem:[#allocation2 + $0x98] sm:$0xff]
    %v62 = vld [vmem:[#allocation2 + $0xa0] sm:$0xff]
    %v63 = vld [vmem:[#allocation2 + $0xa8] sm:$0x1]
    %v64 = vld [vmem:[#allocation2 + $0xb0] sm:$0xff]
    %v65 = vld [vmem:[#allocation2 + $0xb8] sm:$0xff]
    %v66 = vld [vmem:[#allocation2 + $0xc0] sm:$0xff]
    %v67 = vld [vmem:[#allocation2 + $0xc8] sm:$0xff]
    %v68 = vld [vmem:[#allocation2 + $0xd0] sm:$0xff]
    %v69 = vld [vmem:[#allocation2 + $0xd8] sm:$0xff]
    %v70 = vld [vmem:[#allocation2 + $0xe0] sm:$0xff]
    %v71 = vld [vmem:[#allocation2 + $0xe8] sm:$0xff]
    %v72 = vld [vmem:[#allocation2 + $0xf0] sm:$0xff]
    %v73 = vld [vmem:[#allocation2 + $0xf8] sm:$0xff]
    %v74 = vld [vmem:[#allocation2 + $0x100] sm:$0xff]
    %v75 = vld [vmem:[#allocation2 + $0x108] sm:$0xff]
    %v76 = vld [vmem:[#allocation2 + $0x110] sm:$0xff]
    %v77 = vld [vmem:[#allocation2 + $0x118] sm:$0xff]
    %v78 = vld [vmem:[#allocation2 + $0x120] sm:$0xff]
    %v79 = vld [vmem:[#allocation2 + $0x128] sm:$0xff]
    %v80 = vld [vmem:[#allocation2 + $0x130] sm:$0x1]
    %v81 = vld [vmem:[#allocation5] sm:$0xff]
    %v82 = vperm.slane %v46, 0
    %vm83 = vcmask 261120
    %v85 = vsel %vm83, %v81, 0
    %87 = vmatpush.msra.mxu0 0.0
    %88 = vmatpush.msra.mxu0 0.0
    %89 = vmatpush.msra.mxu0 0.0
    %90 = vmatpush.msra.mxu0 0.0
    %91 = vmatpush.msra.mxu0 0.0
    %92 = vmatpush.msra.mxu0 0.0
    %93 = vmatpush.msra.mxu0 0.0
    %94 = vmatpush.msra.mxu0 0.0
    %95 = vmatpush.msra.mxu0 0.0
    %96 = vmatpush.msra.mxu0 0.0
    %97 = vmatpush.msra.mxu0 0.0
    %98 = vmatpush.msra.mxu0 0.0
    %99 = vmatpush.msra.mxu0 %v45
    %100 = vmatpush.msra.mxu0 %v44
    %101 = vmatpush.msra.mxu0 %v43
    %102 = vmatpush.msra.mxu0 %v42
    %103 = vmatmul.f32.gmra.mxu0 %v85
    %v104 = vpop.f32.mrf.mxu0
    %v105 = vadd.f32 %v82, %v104
    %106 = vdwg.mxu0
    %v107 = vmax.f32 %v105, 0.0
    %v108 = vperm.slane %v63, 0
    %109 = vmatpush.msra.mxu0 %v62
    %110 = vmatpush.msra.mxu0 %v61
    %111 = vmatpush.msra.mxu0 %v60
    %112 = vmatpush.msra.mxu0 %v59
    %113 = vmatpush.msra.mxu0 %v58
    %114 = vmatpush.msra.mxu0 %v57
    %115 = vmatpush.msra.mxu0 %v56
    %116 = vmatpush.msra.mxu0 %v55
    %117 = vmatpush.msra.mxu0 %v54
    %118 = vmatpush.msra.mxu0 %v53
    %119 = vmatpush.msra.mxu0 %v52
    %120 = vmatpush.msra.mxu0 %v51
    %121 = vmatpush.msra.mxu0 %v50
    %122 = vmatpush.msra.mxu0 %v49
    %123 = vmatpush.msra.mxu0 %v48
    %124 = vmatpush.msra.mxu0 %v47
    %125 = vmatmul.f32.gmra.mxu0 %v107
    %v126 = vpop.f32.mrf.mxu0
    %v127 = vadd.f32 %v108, %v126
    %128 = vdwg.mxu0
    %v129 = vmax.f32 %v127, 0.0
    %v130 = vperm.slane %v80, 0
    %131 = vmatpush.msra.mxu0 %v79
    %132 = vmatpush.msra.mxu0 %v78
    %133 = vmatpush.msra.mxu0 %v77
    %134 = vmatpush.msra.mxu0 %v76
    %135 = vmatpush.msra.mxu0 %v75
    %136 = vmatpush.msra.mxu0 %v74
    %137 = vmatpush.msra.mxu0 %v73
    %138 = vmatpush.msra.mxu0 %v72
    %139 = vmatpush.msra.mxu0 %v71
    %140 = vmatpush.msra.mxu0 %v70
    %141 = vmatpush.msra.mxu0 %v69
    %142 = vmatpush.msra.mxu0 %v68
    %143 = vmatpush.msra.mxu0 %v67
    %144 = vmatpush.msra.mxu0 %v66
    %145 = vmatpush.msra.mxu0 %v65
    %146 = vmatpush.msra.mxu0 %v64
    %147 = vmatmul.f32.gmra.mxu0 %v129
    %v148 = vpop.f32.mrf.mxu0
    %v149 = vadd.f32 %v130, %v148
    %150 = vdwg.mxu0
    %151 = vmax.xlane.f32.xlu0 %v149
    %v152 = vpop.xlane.xlu0 %151
    %v153 = vsub.f32 %v149, %v152
    %v154 = vmul.f32 %v153, 1.442695
    %v155 = vpow.pop %v154
    %156 = vadd.xlane.f32.xlu0 %v155
    %v157 = vpop.xlane.xlu0 %156
    %v158 = vrcp.pop %v157
    %v159 = vmul.f32 %v157, %v158
    %v160 = vsub.f32 1.0, %v159
    %v161 = vmul.f32 %v158, %v160
    %v162 = vadd.f32 %v158, %v161
    %vm163 = vweird.f32 %v157
    %vm164 = vweird.f32 %v158
    %vm165 = vmor %vm163, %vm164
    %v166 = vsel %vm165, %v158, %v162
    %v167 = vand.u32 2147483647, %v157
    %vm168 = vcmp.eq.f32.partialorder %v167, 8.507059e+37
    %v169 = vand.u32 %v157, 2147483648
    %v170 = vor.u32 1.1754944e-38, %v169
    %v171 = vsel %vm168, %v170, %v166
    %v172 = vmul.f32 %v155, %v171
    %vm173 = vcmask 130048
    %174 = vst.msk [vmem:[#allocation7] sm:$0xff] %vm173, %v172
    // Predicated region
    $region18: #{tpu_custom_call.1} parent=1 // pred_check
      _
    $region19: #{tpu_custom_call.1} parent=1 // pred_check_branch
      %176 = sbr.rel (0) target = $region21
    $region20: #{tpu_custom_call.1} parent=1 // pred_region
      %178 = vsyncadd [#allocation4], 0
      %s180 = sshll.u32 [#allocation7], 4
      %s181 = int_to_ptr.vmem [resolvable:$true] %s180
      %s182 = sshll.u32 %s2, 4
      %s183 = int_to_ptr.hbm [resolvable:$true] %s182
      %185 = dma.vmem_to_hbm [thread:$0]  %s181, 128, %s183, [#allocation4]
    $region21: #{tpu_custom_call.1} parent=1 // pred_fallthru
      _
    // Predicated region
    $region22: #{tpu_custom_call.1} parent=1 // pred_check
      _
    $region23: #{tpu_custom_call.1} parent=1 // pred_check_branch
      %187 = sbr.rel (0) target = $region25
    $region24: #{tpu_custom_call.1} parent=1 // pred_region
      %189 = dma.done [#allocation4], 128
    $region25: #{tpu_custom_call.1} parent=1 // pred_fallthru
      _
    %190 = vsyncpa [#allocation3], 1
    %191 = vsyncpa [#allocation6], 1
    %192 = vsyncpa [#allocation4], 1

</llo_original>
